<compile_context>
chip_gen: v6e
topology: v6e:2x2x1
jax: 0.10.0
libtpu: 0.0.40
codegen_flags: <defaults>
</compile_context>

<pallas_src>
import jax
import jax.numpy as jnp
from jax.experimental import pallas as pl
from jax.experimental.pallas import tpu as pltpu

_LANE = 128


def _round_up(n, m):
    return ((n + m - 1) // m) * m


def _sublane_multiple(dtype):
    # Packed sublane multiple: 8 for f32, 16 for bf16, 32 for int8/fp8.
    return max(8, 32 // jnp.dtype(dtype).itemsize)


def _one_layer_nn_kernel(x_ref, wt_ref, o_ref):
    # x_ref : (TM, K_p)   activation tile (lane-dense K)
    # wt_ref: (K_p, N_p)  pre-transposed weight, VMEM-resident across steps
    # o_ref : (TM, N_p)   lane-dense output tile
    acc = jnp.dot(x_ref[...], wt_ref[...], preferred_element_type=jnp.float32)
    o_ref[...] = jnp.tanh(acc).astype(o_ref.dtype)  # tanh in f32 on the EUP


def one_layer_nn(x, weight, *, tm_max=1024, compute_dtype=None,
                 vmem_budget_bytes=24 * 1024 * 1024, prefer_two_steps=True):
    """x: (B, D_in), weight: (D_out, D_in) -> (B, D_out) = tanh(x @ weight.T)."""
    B, D_in = x.shape
    D_out, D_in_w = weight.shape
    assert D_in == D_in_w, "weight/input dim mismatch"

    out_dtype = x.dtype
    cdt = jnp.dtype(x.dtype if compute_dtype is None else compute_dtype)
    sub = _sublane_multiple(cdt)

    # --- Lane-dense padding of both matmul minor dims. ---
    k_p = _round_up(max(D_in, 1), _LANE)   # contraction dim
    n_p = _round_up(max(D_out, 1), _LANE)  # output dim

    # One-time wrapper-side transpose + pad: (D_out, D_in) -> (K_p, N_p).
    # Zero pad rows/cols contribute 0 to the dot; tanh(0)=0 in pad columns.
    w_t = jnp.pad(weight.astype(cdt).T, ((0, k_p - D_in), (0, n_p - D_out)))

    x_c = x.astype(cdt)
    if k_p != D_in:
        # NOTE: for very small D_in this pad costs extra HBM bytes on x; it
        # buys lane-dense loads + clean MXU K-occupancy (per perf review).
        x_c = jnp.pad(x_c, ((0, 0), (0, k_p - D_in)))

    # --- VMEM budget -> max tile rows (count 2x: Pallas double-buffers every
    # BlockSpec input, including the grid-invariant weight). ---
    in_isz = cdt.itemsize
    out_isz = jnp.dtype(out_dtype).itemsize
    w_bytes = 2 * k_p * n_p * in_isz
    per_row = 2 * (k_p * in_isz + n_p * out_isz)
    rows_cap = max(sub, (vmem_budget_bytes - w_bytes) // per_row)
    tm_cap = max(sub, (min(tm_max, rows_cap) // sub) * sub)

    # --- Adaptive tile size: minimize batch padding for awkward B. ---
    num_tiles = pl.cdiv(B, tm_cap)
    if prefer_two_steps and num_tiles == 1 and B >= 2 * sub:
        num_tiles = 2  # keep both v7x TensorCores busy under "parallel"
    tm = _round_up(pl.cdiv(B, num_tiles), sub)
    b_p = num_tiles * tm
    if b_p != B:
        x_c = jnp.pad(x_c, ((0, b_p - B), (0, 0)))

    out_padded = pl.pallas_call(
        _one_layer_nn_kernel,
        out_shape=jax.ShapeDtypeStruct((b_p, n_p), out_dtype),
        grid_spec=pltpu.PrefetchScalarGridSpec(
            num_scalar_prefetch=0,
            grid=(num_tiles,),
            in_specs=[
                # x: one batch tile per grid step (software-pipelined DMA).
                pl.BlockSpec((tm, k_p), lambda i: (i, 0)),
                # weight: same block every step -> stays VMEM-resident.
                pl.BlockSpec((k_p, n_p), lambda i: (0, 0)),
            ],
            out_specs=pl.BlockSpec((tm, n_p), lambda i: (i, 0)),
        ),
        compiler_params=pltpu.CompilerParams(
            # Batch tiles are independent -> shard across TCs on v7x.
            dimension_semantics=("parallel",),
            vmem_limit_bytes=32 * 1024 * 1024,
        ),
    )(x_c, w_t)

    # Strip batch + lane padding.
    return out_padded[:B, :D_out]


if __name__ == "__main__":
    # Small shapes consistent with the module: D_in=32, D_out=16, batch=8.
    B, D_in, D_out = 8, 32, 16

    key = jax.random.PRNGKey(0)
    kx, kw = jax.random.split(key)
    x = jax.random.normal(kx, (B, D_in), dtype=jnp.float32)
    # Deterministic weight mimicking torch.nn.Linear default init
    # (uniform in [-1/sqrt(D_in), 1/sqrt(D_in)]), shape (D_out, D_in).
    bound = 1.0 / (D_in ** 0.5)
    weight = jax.random.uniform(
        kw, (D_out, D_in), dtype=jnp.float32, minval=-bound, maxval=bound
    )

    out = jax.block_until_ready(one_layer_nn(x, weight))
    ref = jnp.tanh(x @ weight.T)
    assert out.shape == (B, D_out)
    assert jnp.allclose(out, ref, atol=1e-5, rtol=1e-5)

    # Second check: multi-tile batch path + adaptive-tm padding (B=300 -> 2x152).
    B2, D_in2, D_out2 = 300, 64, 48
    k2x, k2w = jax.random.split(jax.random.PRNGKey(1))
    x2 = jax.random.normal(k2x, (B2, D_in2), dtype=jnp.float32)
    w2 = jax.random.uniform(
        k2w, (D_out2, D_in2), dtype=jnp.float32,
        minval=-1.0 / (D_in2 ** 0.5), maxval=1.0 / (D_in2 ** 0.5),
    )
    out2 = jax.block_until_ready(one_layer_nn(x2, w2))
    ref2 = jnp.tanh(x2 @ w2.T)
    assert out2.shape == (B2, D_out2)
    assert jnp.allclose(out2, ref2, atol=1e-5, rtol=1e-5)

    # Third check: bf16 fast path (bf16 x/W, f32 accumulate + tanh, f32 out).
    out3 = jax.block_until_ready(
        one_layer_nn(x2, w2, compute_dtype=jnp.bfloat16))
    assert out3.shape == (B2, D_out2)
    assert jnp.allclose(out3, ref2, atol=3e-2, rtol=3e-2)

    print("KERNEL_OK")
</pallas_src>

<mosaic_0001>
module attributes {stable_mosaic.version = 11 : i64} {
  func.func @_one_layer_nn_kernel(%arg0: i32, %arg1: memref<8x128xf32, #tpu.memory_space<vmem>>, %arg2: memref<128x128xf32, #tpu.memory_space<vmem>>, %arg3: memref<8x128xf32, #tpu.memory_space<vmem>>) attributes {dimension_semantics = [#tpu.dimension_semantics<parallel>], iteration_bounds = array<i64: 1>, scalar_prefetch = 0 : i64, scratch_operands = 0 : i64, tpu.core_type = #tpu.core_type<tc>, window_params = [{transform_indices = @transform_0, window_bounds = array<i64: 8, 128>}, {pipeline_mode = #tpu.pipeline_mode<synchronous>, transform_indices = @transform_1, window_bounds = array<i64: 128, 128>}, {transform_indices = @transform_2, window_bounds = array<i64: 8, 128>}]} {
    %c0 = arith.constant 0 : index
    %c0_0 = arith.constant 0 : index
    %0 = vector.load %arg1[%c0, %c0_0] : memref<8x128xf32, #tpu.memory_space<vmem>>, vector<8x128xf32>
    %c0_1 = arith.constant 0 : index
    %c0_2 = arith.constant 0 : index
    %1 = vector.load %arg2[%c0_1, %c0_2] : memref<128x128xf32, #tpu.memory_space<vmem>>, vector<128x128xf32>
    %cst = arith.constant dense<0.000000e+00> : vector<8x128xf32>
    %2 = tpu.matmul %0, %1, %cst {dimension_numbers = #tpu.dot_dimension_numbers<[1], [0], [0], [1], [0, 0, 1, 1], [], []>} : vector<8x128xf32>, vector<128x128xf32>, vector<8x128xf32> -> vector<8x128xf32>
    %3 = math.tanh %2 : vector<8x128xf32>
    %c0_3 = arith.constant 0 : index
    %c0_4 = arith.constant 0 : index
    %4 = vector.load %arg3[%c0_3, %c0_4] : memref<8x128xf32, #tpu.memory_space<vmem>>, vector<8x128xf32>
    tpu.vector_store %arg3[%c0_3, %c0_4], %3 {strides = array<i32>} : memref<8x128xf32, #tpu.memory_space<vmem>>, vector<8x128xf32>,
    return
  }
  func.func @transform_0(%arg0: i32) -> (i32, i32) {
    %c0_i32 = arith.constant 0 : i32
    %c0_i32_0 = arith.constant 0 : i32
    return %arg0, %c0_i32 : i32, i32
  }
  func.func @transform_1(%arg0: i32) -> (i32, i32) {
    %c0_i32 = arith.constant 0 : i32
    %c0_i32_0 = arith.constant 0 : i32
    %c0_i32_1 = arith.constant 0 : i32
    return %c0_i32, %c0_i32_0 : i32, i32
  }
  func.func @transform_2(%arg0: i32) -> (i32, i32) {
    %c0_i32 = arith.constant 0 : i32
    %c0_i32_0 = arith.constant 0 : i32
    return %arg0, %c0_i32 : i32, i32
  }
}

</mosaic_0001>

<llo_original>
// kernel: tpu_custom_call.1
$region0: #{tpu_custom_call.1}
  #allocation0 [shape = 'u32[]', space=smem, size = 0x4, offset = 0x4, fixed_abs, tag = 'smem constant byte address 0x4 - core index']
  #allocation1 [shape = 'u32[144,128]{1,0:T(1,128)}', space=vmem, size = 0x12000, scoped, tag = 'internal scratch']
  %s0 = inlined_call_operand.hbm [shape: f32[8,128], index: 0, kind: input, shape index: {}]
  %s1 = inlined_call_operand.hbm [shape: f32[128,128], index: 1, kind: input, shape index: {}]
  %s2 = inlined_call_operand.hbm [shape: f32[8,128], index: 2, kind: output, shape index: {}]
  %s3 = sld [smem:[#allocation0]]
  $region26: #{tpu_custom_call.1} parent=0
    _
  %s5 = ssub.s32 1, %s3
  %s6 = scalar_select 0, %s5, %s3
  $region1: #{tpu_custom_call.1} parent=0
    #allocation2 [shape = 'u8[4096]{0}', space=vmem, size = 0x1000, scoped, tag = 'input window, operand 0, single buffered']
    #allocation3 [shape = 's32[1]{0}', space=sflag, size = 0x4, scoped, tag = 'scoped memory for tpu_custom_call.1']
    #allocation4 [shape = 's32[1]{0}', space=sflag, size = 0x4, scoped, tag = 'scoped memory for tpu_custom_call.1']
    #allocation5 [shape = 'u8[65536]{0}', space=vmem, size = 0x10000, scoped, tag = 'input window, operand 1, single buffered']
    #allocation6 [shape = 's32[1]{0}', space=sflag, size = 0x4, scoped, tag = 'scoped memory for tpu_custom_call.1']
    #allocation7 [shape = 'u8[4096]{0}', space=vmem, size = 0x1000, scoped, tag = 'output window, operand 0, single buffered']
    %7 = vsyncpa [#allocation3], 0
    %8 = vsyncpa [#allocation6], 0
    %9 = vsyncpa [#allocation4], 0
    // Predicated region
    $region2: #{tpu_custom_call.1} parent=1 // pred_check
      _
    $region3: #{tpu_custom_call.1} parent=1 // pred_check_branch
      %11 = sbr.rel (0) target = $region5
    $region4: #{tpu_custom_call.1} parent=1 // pred_region
      %s13 = ssub.s32 128, 128
      %14 = vsyncadd [#allocation3], %s13
      %s16 = sshll.u32 [#allocation2], 4
      %s17 = int_to_ptr.vmem [resolvable:$true] %s16
      %19 = dma.hbm_to_vmem [thread:$0]  %s0, 128, %s17, [#allocation3]
    $region5: #{tpu_custom_call.1} parent=1 // pred_fallthru
      _
    // Predicated region
    $region6: #{tpu_custom_call.1} parent=1 // pred_check
      _
    $region7: #{tpu_custom_call.1} parent=1 // pred_check_branch
      %21 = sbr.rel (0) target = $region9
    $region8: #{tpu_custom_call.1} parent=1 // pred_region
      %s23 = ssub.s32 2048, 2048
      %24 = vsyncadd [#allocation6], %s23
      %s25 = sshll.u32 [#allocation5], 4
      %s26 = int_to_ptr.vmem [resolvable:$true] %s25
      %31 = dma.hbm_to_vmem [thread:$0]  %s1, 2048, %s26, [#allocation6], 128, 128, 8
    $region9: #{tpu_custom_call.1} parent=1 // pred_fallthru
      _
    // Predicated region
    $region10: #{tpu_custom_call.1} parent=1 // pred_check
      _
    $region11: #{tpu_custom_call.1} parent=1 // pred_check_branch
      %33 = sbr.rel (0) target = $region13
    $region12: #{tpu_custom_call.1} parent=1 // pred_region
      %34 = dma.done [#allocation3], 128
    $region13: #{tpu_custom_call.1} parent=1 // pred_fallthru
      _
    // Predicated region
    $region14: #{tpu_custom_call.1} parent=1 // pred_check
      _
    $region15: #{tpu_custom_call.1} parent=1 // pred_check_branch
      %36 = sbr.rel (0) target = $region17
    $region16: #{tpu_custom_call.1} parent=1 // pred_region
      %37 = dma.done [#allocation6], 2048
    $region17: #{tpu_custom_call.1} parent=1 // pred_fallthru
      _
    %v38 = vld [vmem:[#allocation2] sm:$0xff]
    %v39 = vld [vmem:[#allocation5] sm:$0xff]
    %v40 = vld [vmem:[#allocation5 + $0x8] sm:$0xff]
    %v41 = vld [vmem:[#allocation5 + $0x10] sm:$0xff]
    %v42 = vld [vmem:[#allocation5 + $0x18] sm:$0xff]
    %v43 = vld [vmem:[#allocation5 + $0x20] sm:$0xff]
    %v44 = vld [vmem:[#allocation5 + $0x28] sm:$0xff]
    %v45 = vld [vmem:[#allocation5 + $0x30] sm:$0xff]
    %v46 = vld [vmem:[#allocation5 + $0x38] sm:$0xff]
    %v47 = vld [vmem:[#allocation5 + $0x40] sm:$0xff]
    %v48 = vld [vmem:[#allocation5 + $0x48] sm:$0xff]
    %v49 = vld [vmem:[#allocation5 + $0x50] sm:$0xff]
    %v50 = vld [vmem:[#allocation5 + $0x58] sm:$0xff]
    %v51 = vld [vmem:[#allocation5 + $0x60] sm:$0xff]
    %v52 = vld [vmem:[#allocation5 + $0x68] sm:$0xff]
    %v53 = vld [vmem:[#allocation5 + $0x70] sm:$0xff]
    %v54 = vld [vmem:[#allocation5 + $0x78] sm:$0xff]
    %55 = vmatprep.subr.mxu0 0.0
    %56 = vmatpush1.msra.mxu0 %v54
    %57 = vmatprep.subr.mxu0 0.0
    %58 = vmatpush1.msra.mxu0 %v53
    %59 = vmatprep.subr.mxu0 0.0
    %60 = vmatpush1.msra.mxu0 %v52
    %61 = vmatprep.subr.mxu0 0.0
    %62 = vmatpush1.msra.mxu0 %v51
    %63 = vmatprep.subr.mxu0 0.0
    %64 = vmatpush1.msra.mxu0 %v50
    %65 = vmatprep.subr.mxu0 0.0
    %66 = vmatpush1.msra.mxu0 %v49
    %67 = vmatprep.subr.mxu0 0.0
    %68 = vmatpush1.msra.mxu0 %v48
    %69 = vmatprep.subr.mxu0 0.0
    %70 = vmatpush1.msra.mxu0 %v47
    %71 = vmatprep.subr.mxu0 0.0
    %72 = vmatpush1.msra.mxu0 %v46
    %73 = vmatprep.subr.mxu0 0.0
    %74 = vmatpush1.msra.mxu0 %v45
    %75 = vmatprep.subr.mxu0 0.0
    %76 = vmatpush1.msra.mxu0 %v44
    %77 = vmatprep.subr.mxu0 0.0
    %78 = vmatpush1.msra.mxu0 %v43
    %79 = vmatprep.subr.mxu0 0.0
    %80 = vmatpush1.msra.mxu0 %v42
    %81 = vmatprep.subr.mxu0 0.0
    %82 = vmatpush1.msra.mxu0 %v41
    %83 = vmatprep.subr.mxu0 0.0
    %84 = vmatpush1.msra.mxu0 %v40
    %85 = vmatprep.subr.mxu0 0.0
    %86 = vmatpush1.msra.mxu0 %v39
    %87 = vmatprep.subr.mxu0 0.0
    %88 = vmatpush2.msra.mxu0 0.0
    %89 = vmatprep.subr.mxu0 0.0
    %90 = vmatpush2.msra.mxu0 0.0
    %91 = vmatprep.subr.mxu0 0.0
    %92 = vmatpush2.msra.mxu0 0.0
    %93 = vmatprep.subr.mxu0 0.0
    %94 = vmatpush2.msra.mxu0 0.0
    %95 = vmatprep.subr.mxu0 0.0
    %96 = vmatpush2.msra.mxu0 0.0
    %97 = vmatprep.subr.mxu0 0.0
    %98 = vmatpush2.msra.mxu0 0.0
    %99 = vmatprep.subr.mxu0 0.0
    %100 = vmatpush2.msra.mxu0 0.0
    %101 = vmatprep.subr.mxu0 0.0
    %102 = vmatpush2.msra.mxu0 0.0
    %103 = vmatprep.subr.mxu0 0.0
    %104 = vmatpush2.msra.mxu0 0.0
    %105 = vmatprep.subr.mxu0 0.0
    %106 = vmatpush2.msra.mxu0 0.0
    %107 = vmatprep.subr.mxu0 0.0
    %108 = vmatpush2.msra.mxu0 0.0
    %109 = vmatprep.subr.mxu0 0.0
    %110 = vmatpush2.msra.mxu0 0.0
    %111 = vmatprep.subr.mxu0 0.0
    %112 = vmatpush2.msra.mxu0 0.0
    %113 = vmatprep.subr.mxu0 0.0
    %114 = vmatpush2.msra.mxu0 0.0
    %115 = vmatprep.subr.mxu0 0.0
    %116 = vmatpush2.msra.mxu0 0.0
    %117 = vmatprep.subr.mxu0 0.0
    %118 = vmatpush2.msra.mxu0 0.0
    %119 = vmatprep.mubr.f32.mxu0 0.0
    %120 = vmatmul.mubr.f32.gmra.mxu0 %v38
    %v121 = vpop.f32.mrf.mxu0
    %v122 = vadd.f32 0.0, %v121
    %v123 = vpop.f32.mrf.mxu0
    %124 = vdwg.mxu0
    %v125 = vtanh.pop %v122
    %126 = vst [vmem:[#allocation7] sm:$0xff] %v125
    // Predicated region
    $region18: #{tpu_custom_call.1} parent=1 // pred_check
      _
    $region19: #{tpu_custom_call.1} parent=1 // pred_check_branch
      %128 = sbr.rel (0) target = $region21
    $region20: #{tpu_custom_call.1} parent=1 // pred_region
      %s130 = ssub.s32 128, 128
      %131 = vsyncadd [#allocation4], %s130
      %s133 = sshll.u32 [#allocation7], 4
      %s134 = int_to_ptr.vmem [resolvable:$true] %s133
      %136 = dma.vmem_to_hbm [thread:$0]  %s134, 128, %s2, [#allocation4]
    $region21: #{tpu_custom_call.1} parent=1 // pred_fallthru
      _
    // Predicated region
    $region22: #{tpu_custom_call.1} parent=1 // pred_check
      _
    $region23: #{tpu_custom_call.1} parent=1 // pred_check_branch
      %138 = sbr.rel (0) target = $region25
    $region24: #{tpu_custom_call.1} parent=1 // pred_region
      %139 = dma.done [#allocation4], 128
    $region25: #{tpu_custom_call.1} parent=1 // pred_fallthru
      _
    %140 = vsyncpa [#allocation3], 1
    %141 = vsyncpa [#allocation6], 1
    %142 = vsyncpa [#allocation4], 1

</llo_original>
